<compile_context>
chip_gen: v6e
topology: v6e:2x2x1
jax: 0.10.0
libtpu: 0.0.40
codegen_flags: <defaults>
</compile_context>

<pallas_src>
import functools

import jax
import jax.numpy as jnp
from jax.experimental import pallas as pl
from jax.experimental.pallas import tpu as pltpu


def _round_up(x, m):
    return (x + m - 1) // m * m


def _node_attention_kernel(h2_ref, abig_ref, s_ref, st_ref, wcbig_ref, z_ref,
                           *, heads, n_nodes, e_dim):
    NE = n_nodes * e_dim
    Hf = h2_ref[...].astype(jnp.float32)            # (tm, N*E) lane-dense tile
    h0 = Hf[:, :e_dim]                              # (tm, E)  node-0 features (lanes 0..E-1)

    # One fused MXU matmul yields the per-head score weights already tiled along N.
    g_all = jnp.dot(h0, abig_ref[...], preferred_element_type=jnp.float32)  # (tm, heads*N*E)

    S = s_ref[...]                                  # (N*E, N)  collapse each E-segment
    ST = st_ref[...]                                # (N, N*E)  expand per-node scalar over E

    z_acc = jnp.zeros(z_ref.shape, jnp.float32)
    for i in range(heads):                          # heads is small & static -> unrolled
        g_tiled = g_all[:, i * NE:(i + 1) * NE]     # (tm, N*E); [:, n*E+e] = g_i[:, e]
        # hij[m, n] = sum_e H[m, n, e] * g_i[m, e]  -- segmented reduction on the MXU
        hij = jnp.dot(Hf * g_tiled, S, preferred_element_type=jnp.float32)  # (tm, N)
        # exact softmax over the node axis (dim=1 of the torch code), f32
        mx = jnp.max(hij, axis=-1, keepdims=True)
        p = jnp.exp(hij - mx)
        alpha = p / jnp.sum(p, axis=-1, keepdims=True)                       # (tm, N)
        # broadcast alpha back to the lane-dense N*E layout with one tiny K=N matmul
        alpha_exp = jnp.dot(alpha, ST, preferred_element_type=jnp.float32)   # (tm, N*E)
        # sum_n alpha[m,n] * (H @ Wc_i)[m,n,:]  ==  (H * alpha_exp) @ Wc_big_i
        z_acc = z_acc + jnp.dot(Hf * alpha_exp, wcbig_ref[i],
                                preferred_element_type=jnp.float32)          # (tm, O)

    z_ref[...] = (z_acc * (1.0 / heads)).astype(z_ref.dtype)                 # fold 1/heads


def node_attention(h, Wt, Ws, Wc, *, temp=0.2, block_m=1024):
    """h: (B, L, N, E); Wt/Ws/Wc: (heads, E, O) with O == E (square weights)."""
    B, L, N, E = h.shape
    heads, _, O = Wc.shape
    M = B * L
    NE = N * E

    # A_i = Wt_i @ Ws_i^T / temp (folds the temperature divide), tiled along the node axis
    # and concatenated over heads so ONE (tm,E)@(E,heads*N*E) matmul produces the per-head
    # score weights already in the lane-dense layout.
    A = jnp.einsum("heo,hfo->hef", Wt, Ws).astype(jnp.float32) / temp        # (heads, E, E)
    A_big = jnp.broadcast_to(jnp.transpose(A, (1, 0, 2))[:, :, None, :],
                             (E, heads, N, E)).reshape(E, heads * NE)        # (E, heads*N*E)

    # 0/1 segment matrices (constant, tiny): S collapses each E-wide segment, S^T expands.
    S = jnp.repeat(jnp.eye(N, dtype=jnp.float32), E, axis=0)                 # (N*E, N)
    ST = S.T                                                                 # (N, N*E)

    # Wc tiled along the node axis so (H*alpha_exp) @ Wc_big_i == sum_n alpha * (H @ Wc_i).
    Wc_big = jnp.broadcast_to(Wc.astype(jnp.float32)[:, None, :, :],
                              (heads, N, E, O)).reshape(heads, NE, O)        # (heads, N*E, O)

    H2 = h.reshape(M, NE)                            # lane-dense view: N*E on the lane axis

    # Tile M: tm multiple of 8 (sublane rule); large default to amortize per-step overhead.
    tm = min(block_m, _round_up(M, 8))
    num_steps = pl.cdiv(M, tm)
    if num_steps > 1 and num_steps % 2 == 1:
        num_steps += 1   # even step count -> balanced megacore split on 2-TC chips
    M_pad = num_steps * tm
    if M_pad != M:
        # Zero padding is safe: zero rows -> hij = 0 -> uniform alpha -> Z = 0, sliced off below.
        H2 = jnp.pad(H2, ((0, M_pad - M), (0, 0)))

    kernel = functools.partial(_node_attention_kernel, heads=heads, n_nodes=N, e_dim=E)

    Z = pl.pallas_call(
        kernel,
        out_shape=jax.ShapeDtypeStruct((M_pad, O), jnp.float32),
        grid=(num_steps,),
        in_specs=[
            pl.BlockSpec((tm, NE), lambda m: (m, 0)),
            # Grid-invariant weights: same block index every step -> no re-DMA.
            pl.BlockSpec((E, heads * NE), lambda m: (0, 0)),
            pl.BlockSpec((NE, N), lambda m: (0, 0)),
            pl.BlockSpec((N, NE), lambda m: (0, 0)),
            pl.BlockSpec((heads, NE, O), lambda m: (0, 0, 0)),
        ],
        out_specs=pl.BlockSpec((tm, O), lambda m: (m, 0)),
        compiler_params=pltpu.CompilerParams(
            dimension_semantics=("parallel",)),
    )(H2, A_big, S, ST, Wc_big)

    return Z[:M].reshape(B, L, O)


def node_attention_ref(h, Wt, Ws, Wc, *, temp=0.2):
    """Pure-JAX reference mirroring the PyTorch forward."""
    B, L, N, E = h.shape
    heads = Wt.shape[0]
    H = h.reshape(B * L, N, E)
    Z = None
    for i in range(heads):
        hi = H[:, 0, :] @ Wt[i]                                   # (M, O)
        hj = jnp.einsum("mne,eo->mno", H, Ws[i])                  # (M, N, O)
        hij = jnp.einsum("mno,mo->mn", hj, hi) / temp             # (M, N)
        alpha = jax.nn.softmax(hij, axis=1)                       # softmax over dim=1
        Hc = jnp.einsum("mne,eo->mno", H, Wc[i])                  # (M, N, O)
        contrib = jnp.sum(alpha[:, :, None] * Hc, axis=1)         # (M, O)
        Z = contrib if Z is None else Z + contrib
    Z = Z / heads
    return Z.reshape(B, L, -1)


def glorot(key, shape):
    """Glorot/Xavier uniform matching utils.glorot semantics."""
    fan_in, fan_out = shape[-2], shape[-1]
    limit = (6.0 / (fan_in + fan_out)) ** 0.5
    return jax.random.uniform(key, shape, jnp.float32, -limit, limit)


if __name__ == "__main__":
    # Small shapes consistent with the module: h is B*L*N*E, in_size == out_size == E.
    B, L, N, E = 2, 4, 8, 32
    atn_heads = 3
    temp = 0.2

    key = jax.random.PRNGKey(0)
    k_h, k_wt, k_ws, k_wc = jax.random.split(key, 4)

    h = jax.random.normal(k_h, (B, L, N, E), jnp.float32)
    Wt = glorot(k_wt, (atn_heads, E, E))
    Ws = glorot(k_ws, (atn_heads, E, E))
    Wc = glorot(k_wc, (atn_heads, E, E))

    Z = node_attention(h, Wt, Ws, Wc, temp=temp)
    jax.block_until_ready(Z)

    Z_ref = node_attention_ref(h, Wt, Ws, Wc, temp=temp)
    assert Z.shape == (B, L, E), Z.shape
    max_diff = float(jnp.max(jnp.abs(Z - Z_ref)))
    assert jnp.allclose(Z, Z_ref, atol=1e-3, rtol=1e-3), f"mismatch vs reference: {max_diff:e}"

    print("KERNEL_OK")
</pallas_src>

<mosaic_0001>
module attributes {stable_mosaic.version = 11 : i64} {
  func.func @_node_attention_kernel(%arg0: i32, %arg1: memref<8x256xf32, #tpu.memory_space<vmem>>, %arg2: memref<32x768xf32, #tpu.memory_space<vmem>>, %arg3: memref<256x8xf32, #tpu.memory_space<vmem>>, %arg4: memref<8x256xf32, #tpu.memory_space<vmem>>, %arg5: memref<3x256x32xf32, #tpu.memory_space<vmem>>, %arg6: memref<8x32xf32, #tpu.memory_space<vmem>>) attributes {dimension_semantics = [#tpu.dimension_semantics<parallel>], iteration_bounds = array<i64: 1>, scalar_prefetch = 0 : i64, scratch_operands = 0 : i64, tpu.core_type = #tpu.core_type<tc>, window_params = [{transform_indices = @transform_0, window_bounds = array<i64: 8, 256>}, {pipeline_mode = #tpu.pipeline_mode<synchronous>, transform_indices = @transform_1, window_bounds = array<i64: 32, 768>}, {pipeline_mode = #tpu.pipeline_mode<synchronous>, transform_indices = @transform_2, window_bounds = array<i64: 256, 8>}, {pipeline_mode = #tpu.pipeline_mode<synchronous>, transform_indices = @transform_3, window_bounds = array<i64: 8, 256>}, {pipeline_mode = #tpu.pipeline_mode<synchronous>, transform_indices = @transform_4, window_bounds = array<i64: 3, 256, 32>}, {transform_indices = @transform_5, window_bounds = array<i64: 8, 32>}]} {
    %c0 = arith.constant 0 : index
    %c0_0 = arith.constant 0 : index
    %0 = vector.load %arg1[%c0, %c0_0] : memref<8x256xf32, #tpu.memory_space<vmem>>, vector<8x256xf32>
    %1 = vector.extract_strided_slice %0 {offsets = [0, 0], sizes = [8, 32], strides = [1, 1]} : vector<8x256xf32> to vector<8x32xf32>
    %c0_1 = arith.constant 0 : index
    %c0_2 = arith.constant 0 : index
    %2 = vector.load %arg2[%c0_1, %c0_2] : memref<32x768xf32, #tpu.memory_space<vmem>>, vector<32x768xf32>
    %cst = arith.constant dense<0.000000e+00> : vector<8x768xf32>
    %3 = tpu.matmul %1, %2, %cst {dimension_numbers = #tpu.dot_dimension_numbers<[1], [0], [0], [1], [0, 0, 1, 1], [], []>} : vector<8x32xf32>, vector<32x768xf32>, vector<8x768xf32> -> vector<8x768xf32>
    %c0_3 = arith.constant 0 : index
    %c0_4 = arith.constant 0 : index
    %4 = vector.load %arg3[%c0_3, %c0_4] : memref<256x8xf32, #tpu.memory_space<vmem>>, vector<256x8xf32>
    %c0_5 = arith.constant 0 : index
    %c0_6 = arith.constant 0 : index
    %5 = vector.load %arg4[%c0_5, %c0_6] : memref<8x256xf32, #tpu.memory_space<vmem>>, vector<8x256xf32>
    %cst_7 = arith.constant 0.000000e+00 : f32
    %6 = vector.broadcast %cst_7 : f32 to vector<8x32xf32>
    %7 = vector.extract_strided_slice %3 {offsets = [0, 0], sizes = [8, 256], strides = [1, 1]} : vector<8x768xf32> to vector<8x256xf32>
    %8 = arith.mulf %0, %7 : vector<8x256xf32>
    %cst_8 = arith.constant dense<0.000000e+00> : vector<8x8xf32>
    %9 = tpu.matmul %8, %4, %cst_8 {dimension_numbers = #tpu.dot_dimension_numbers<[1], [0], [0], [1], [0, 0, 1, 1], [], []>} : vector<8x256xf32>, vector<256x8xf32>, vector<8x8xf32> -> vector<8x8xf32>
    %cst_9 = arith.constant dense<0xFF800000> : vector<8xf32>
    %10 = vector.multi_reduction <maximumf>, %9, %cst_9 [1] : vector<8x8xf32> to vector<8xf32>
    %11 = vector.shape_cast %10 : vector<8xf32> to vector<8x1xf32>
    %12 = vector.broadcast %11 : vector<8x1xf32> to vector<8x8xf32>
    %13 = arith.subf %9, %12 : vector<8x8xf32>
    %14 = math.exp %13 : vector<8x8xf32>
    %cst_10 = arith.constant dense<0.000000e+00> : vector<8xf32>
    %15 = vector.multi_reduction <add>, %14, %cst_10 [1] : vector<8x8xf32> to vector<8xf32>
    %16 = vector.shape_cast %15 : vector<8xf32> to vector<8x1xf32>
    %17 = vector.broadcast %16 : vector<8x1xf32> to vector<8x8xf32>
    %18 = arith.divf %14, %17 : vector<8x8xf32>
    %cst_11 = arith.constant dense<0.000000e+00> : vector<8x256xf32>
    %19 = tpu.matmul %18, %5, %cst_11 {dimension_numbers = #tpu.dot_dimension_numbers<[1], [0], [0], [1], [0, 0, 1, 1], [], []>} : vector<8x8xf32>, vector<8x256xf32>, vector<8x256xf32> -> vector<8x256xf32>
    %20 = arith.mulf %0, %19 : vector<8x256xf32>
    %c0_12 = arith.constant 0 : index
    %c0_13 = arith.constant 0 : index
    %c0_14 = arith.constant 0 : index
    %21 = vector.load %arg5[%c0_12, %c0_13, %c0_14] : memref<3x256x32xf32, #tpu.memory_space<vmem>>, vector<1x256x32xf32>
    %22 = vector.shape_cast %21 : vector<1x256x32xf32> to vector<256x32xf32>
    %cst_15 = arith.constant dense<0.000000e+00> : vector<8x32xf32>
    %23 = tpu.matmul %20, %22, %cst_15 {dimension_numbers = #tpu.dot_dimension_numbers<[1], [0], [0], [1], [0, 0, 1, 1], [], []>} : vector<8x256xf32>, vector<256x32xf32>, vector<8x32xf32> -> vector<8x32xf32>
    %24 = arith.addf %6, %23 : vector<8x32xf32>
    %25 = vector.extract_strided_slice %3 {offsets = [0, 256], sizes = [8, 256], strides = [1, 1]} : vector<8x768xf32> to vector<8x256xf32>
    %26 = arith.mulf %0, %25 : vector<8x256xf32>
    %cst_16 = arith.constant dense<0.000000e+00> : vector<8x8xf32>
    %27 = tpu.matmul %26, %4, %cst_16 {dimension_numbers = #tpu.dot_dimension_numbers<[1], [0], [0], [1], [0, 0, 1, 1], [], []>} : vector<8x256xf32>, vector<256x8xf32>, vector<8x8xf32> -> vector<8x8xf32>
    %cst_17 = arith.constant dense<0xFF800000> : vector<8xf32>
    %28 = vector.multi_reduction <maximumf>, %27, %cst_17 [1] : vector<8x8xf32> to vector<8xf32>
    %29 = vector.shape_cast %28 : vector<8xf32> to vector<8x1xf32>
    %30 = vector.broadcast %29 : vector<8x1xf32> to vector<8x8xf32>
    %31 = arith.subf %27, %30 : vector<8x8xf32>
    %32 = math.exp %31 : vector<8x8xf32>
    %cst_18 = arith.constant dense<0.000000e+00> : vector<8xf32>
    %33 = vector.multi_reduction <add>, %32, %cst_18 [1] : vector<8x8xf32> to vector<8xf32>
    %34 = vector.shape_cast %33 : vector<8xf32> to vector<8x1xf32>
    %35 = vector.broadcast %34 : vector<8x1xf32> to vector<8x8xf32>
    %36 = arith.divf %32, %35 : vector<8x8xf32>
    %cst_19 = arith.constant dense<0.000000e+00> : vector<8x256xf32>
    %37 = tpu.matmul %36, %5, %cst_19 {dimension_numbers = #tpu.dot_dimension_numbers<[1], [0], [0], [1], [0, 0, 1, 1], [], []>} : vector<8x8xf32>, vector<8x256xf32>, vector<8x256xf32> -> vector<8x256xf32>
    %38 = arith.mulf %0, %37 : vector<8x256xf32>
    %c1 = arith.constant 1 : index
    %c0_20 = arith.constant 0 : index
    %c0_21 = arith.constant 0 : index
    %39 = vector.load %arg5[%c1, %c0_20, %c0_21] : memref<3x256x32xf32, #tpu.memory_space<vmem>>, vector<1x256x32xf32>
    %40 = vector.shape_cast %39 : vector<1x256x32xf32> to vector<256x32xf32>
    %cst_22 = arith.constant dense<0.000000e+00> : vector<8x32xf32>
    %41 = tpu.matmul %38, %40, %cst_22 {dimension_numbers = #tpu.dot_dimension_numbers<[1], [0], [0], [1], [0, 0, 1, 1], [], []>} : vector<8x256xf32>, vector<256x32xf32>, vector<8x32xf32> -> vector<8x32xf32>
    %42 = arith.addf %24, %41 : vector<8x32xf32>
    %43 = vector.extract_strided_slice %3 {offsets = [0, 512], sizes = [8, 256], strides = [1, 1]} : vector<8x768xf32> to vector<8x256xf32>
    %44 = arith.mulf %0, %43 : vector<8x256xf32>
    %cst_23 = arith.constant dense<0.000000e+00> : vector<8x8xf32>
    %45 = tpu.matmul %44, %4, %cst_23 {dimension_numbers = #tpu.dot_dimension_numbers<[1], [0], [0], [1], [0, 0, 1, 1], [], []>} : vector<8x256xf32>, vector<256x8xf32>, vector<8x8xf32> -> vector<8x8xf32>
    %cst_24 = arith.constant dense<0xFF800000> : vector<8xf32>
    %46 = vector.multi_reduction <maximumf>, %45, %cst_24 [1] : vector<8x8xf32> to vector<8xf32>
    %47 = vector.shape_cast %46 : vector<8xf32> to vector<8x1xf32>
    %48 = vector.broadcast %47 : vector<8x1xf32> to vector<8x8xf32>
    %49 = arith.subf %45, %48 : vector<8x8xf32>
    %50 = math.exp %49 : vector<8x8xf32>
    %cst_25 = arith.constant dense<0.000000e+00> : vector<8xf32>
    %51 = vector.multi_reduction <add>, %50, %cst_25 [1] : vector<8x8xf32> to vector<8xf32>
    %52 = vector.shape_cast %51 : vector<8xf32> to vector<8x1xf32>
    %53 = vector.broadcast %52 : vector<8x1xf32> to vector<8x8xf32>
    %54 = arith.divf %50, %53 : vector<8x8xf32>
    %cst_26 = arith.constant dense<0.000000e+00> : vector<8x256xf32>
    %55 = tpu.matmul %54, %5, %cst_26 {dimension_numbers = #tpu.dot_dimension_numbers<[1], [0], [0], [1], [0, 0, 1, 1], [], []>} : vector<8x8xf32>, vector<8x256xf32>, vector<8x256xf32> -> vector<8x256xf32>
    %56 = arith.mulf %0, %55 : vector<8x256xf32>
    %c2 = arith.constant 2 : index
    %c0_27 = arith.constant 0 : index
    %c0_28 = arith.constant 0 : index
    %57 = vector.load %arg5[%c2, %c0_27, %c0_28] : memref<3x256x32xf32, #tpu.memory_space<vmem>>, vector<1x256x32xf32>
    %58 = vector.shape_cast %57 : vector<1x256x32xf32> to vector<256x32xf32>
    %cst_29 = arith.constant dense<0.000000e+00> : vector<8x32xf32>
    %59 = tpu.matmul %56, %58, %cst_29 {dimension_numbers = #tpu.dot_dimension_numbers<[1], [0], [0], [1], [0, 0, 1, 1], [], []>} : vector<8x256xf32>, vector<256x32xf32>, vector<8x32xf32> -> vector<8x32xf32>
    %60 = arith.addf %42, %59 : vector<8x32xf32>
    %cst_30 = arith.constant 0.333333343 : f32
    %61 = vector.broadcast %cst_30 : f32 to vector<8x32xf32>
    %62 = arith.mulf %60, %61 : vector<8x32xf32>
    %c0_31 = arith.constant 0 : index
    %c0_32 = arith.constant 0 : index
    %63 = vector.load %arg6[%c0_31, %c0_32] : memref<8x32xf32, #tpu.memory_space<vmem>>, vector<8x32xf32>
    tpu.vector_store %arg6[%c0_31, %c0_32], %62 {strides = array<i32>} : memref<8x32xf32, #tpu.memory_space<vmem>>, vector<8x32xf32>,
    return
  }
  func.func @transform_0(%arg0: i32) -> (i32, i32) {
    %c0_i32 = arith.constant 0 : i32
    %c0_i32_0 = arith.constant 0 : i32
    return %arg0, %c0_i32 : i32, i32
  }
  func.func @transform_1(%arg0: i32) -> (i32, i32) {
    %c0_i32 = arith.constant 0 : i32
    %c0_i32_0 = arith.constant 0 : i32
    %c0_i32_1 = arith.constant 0 : i32
    return %c0_i32, %c0_i32_0 : i32, i32
  }
  func.func @transform_2(%arg0: i32) -> (i32, i32) {
    %c0_i32 = arith.constant 0 : i32
    %c0_i32_0 = arith.constant 0 : i32
    %c0_i32_1 = arith.constant 0 : i32
    return %c0_i32, %c0_i32_0 : i32, i32
  }
  func.func @transform_3(%arg0: i32) -> (i32, i32) {
    %c0_i32 = arith.constant 0 : i32
    %c0_i32_0 = arith.constant 0 : i32
    %c0_i32_1 = arith.constant 0 : i32
    return %c0_i32, %c0_i32_0 : i32, i32
  }
  func.func @transform_4(%arg0: i32) -> (i32, i32, i32) {
    %c0_i32 = arith.constant 0 : i32
    %c0_i32_0 = arith.constant 0 : i32
    %c0_i32_1 = arith.constant 0 : i32
    %c0_i32_2 = arith.constant 0 : i32
    return %c0_i32, %c0_i32_0, %c0_i32_1 : i32, i32, i32
  }
  func.func @transform_5(%arg0: i32) -> (i32, i32) {
    %c0_i32 = arith.constant 0 : i32
    %c0_i32_0 = arith.constant 0 : i32
    return %arg0, %c0_i32 : i32, i32
  }
}

</mosaic_0001>

<llo_original>
// kernel: tpu_custom_call.1
$region0: #{tpu_custom_call.1}
  #allocation0 [shape = 'u32[]', space=smem, size = 0x4, offset = 0x4, fixed_abs, tag = 'smem constant byte address 0x4 - core index']
  #allocation1 [shape = 'u32[144,128]{1,0:T(1,128)}', space=vmem, size = 0x12000, scoped, tag = 'internal scratch']
  %s0 = inlined_call_operand.vmem [shape: f32[8,256], index: 0, kind: input, shape index: {}]
  %s1 = inlined_call_operand.vmem [shape: f32[32,768], index: 1, kind: input, shape index: {}]
  %s2 = inlined_call_operand.vmem [shape: f32[256,8], index: 2, kind: input, shape index: {}]
  %s3 = inlined_call_operand.vmem [shape: f32[8,256], index: 3, kind: input, shape index: {}]
  %s4 = inlined_call_operand.vmem [shape: f32[3,256,32], index: 4, kind: input, shape index: {}]
  %s5 = inlined_call_operand.hbm [shape: f32[8,32], index: 5, kind: output, shape index: {}]
  %s6 = sld [smem:[#allocation0]]
  $region30: #{tpu_custom_call.1} parent=0
    _
  %s8 = ssub.s32 1, %s6
  %s9 = scalar_select 0, %s8, %s6
  $region1: #{tpu_custom_call.1} parent=0
    #allocation2 [shape = 'u8[4096]{0}', space=vmem, size = 0x1000, scoped, tag = 'output window, operand 0, single buffered']
    #allocation3 [shape = 's32[1]{0}', space=sflag, size = 0x4, scoped, tag = 'scoped memory for tpu_custom_call.1']
    %10 = vsyncpa [#allocation3], 0
    // Predicated region
    $region2: #{tpu_custom_call.1} parent=1 // pred_check
      _
    $region3: #{tpu_custom_call.1} parent=1 // pred_check_branch
      %12 = sbr.rel (0) target = $region5
    $region4: #{tpu_custom_call.1} parent=1 // pred_region
      _
    $region5: #{tpu_custom_call.1} parent=1 // pred_fallthru
      _
    // Predicated region
    $region6: #{tpu_custom_call.1} parent=1 // pred_check
      _
    $region7: #{tpu_custom_call.1} parent=1 // pred_check_branch
      %14 = sbr.rel (0) target = $region9
    $region8: #{tpu_custom_call.1} parent=1 // pred_region
      _
    $region9: #{tpu_custom_call.1} parent=1 // pred_fallthru
      _
    // Predicated region
    $region10: #{tpu_custom_call.1} parent=1 // pred_check
      _
    $region11: #{tpu_custom_call.1} parent=1 // pred_check_branch
      %16 = sbr.rel (0) target = $region13
    $region12: #{tpu_custom_call.1} parent=1 // pred_region
      _
    $region13: #{tpu_custom_call.1} parent=1 // pred_fallthru
      _
    // Predicated region
    $region14: #{tpu_custom_call.1} parent=1 // pred_check
      _
    $region15: #{tpu_custom_call.1} parent=1 // pred_check_branch
      %18 = sbr.rel (0) target = $region17
    $region16: #{tpu_custom_call.1} parent=1 // pred_region
      _
    $region17: #{tpu_custom_call.1} parent=1 // pred_fallthru
      _
    // Predicated region
    $region18: #{tpu_custom_call.1} parent=1 // pred_check
      _
    $region19: #{tpu_custom_call.1} parent=1 // pred_check_branch
      %20 = sbr.rel (0) target = $region21
    $region20: #{tpu_custom_call.1} parent=1 // pred_region
      _
    $region21: #{tpu_custom_call.1} parent=1 // pred_fallthru
      _
    %v21 = vld [vmem:[%s0] sm:$0xff]
    %v22 = vld [vmem:[%s0 + $0x8] sm:$0xff]
    %v23 = vld [vmem:[%s1] sm:$0xff]
    %v24 = vld [vmem:[%s1 + $0x8] sm:$0xff]
    %v25 = vld [vmem:[%s1 + $0x10] sm:$0xff]
    %v26 = vld [vmem:[%s1 + $0x18] sm:$0xff]
    %v27 = vld [vmem:[%s1 + $0x20] sm:$0xff]
    %v28 = vld [vmem:[%s1 + $0x28] sm:$0xff]
    %v29 = vld [vmem:[%s1 + $0x30] sm:$0xff]
    %v30 = vld [vmem:[%s1 + $0x38] sm:$0xff]
    %v31 = vld [vmem:[%s1 + $0x40] sm:$0xff]
    %v32 = vld [vmem:[%s1 + $0x48] sm:$0xff]
    %v33 = vld [vmem:[%s1 + $0x50] sm:$0xff]
    %v34 = vld [vmem:[%s1 + $0x58] sm:$0xff]
    %v35 = vld [vmem:[%s1 + $0x60] sm:$0xff]
    %v36 = vld [vmem:[%s1 + $0x68] sm:$0xff]
    %v37 = vld [vmem:[%s1 + $0x70] sm:$0xff]
    %v38 = vld [vmem:[%s1 + $0x78] sm:$0xff]
    %v39 = vld [vmem:[%s1 + $0x80] sm:$0xff]
    %v40 = vld [vmem:[%s1 + $0x88] sm:$0xff]
    %v41 = vld [vmem:[%s1 + $0x90] sm:$0xff]
    %v42 = vld [vmem:[%s1 + $0x98] sm:$0xff]
    %v43 = vld [vmem:[%s1 + $0xa0] sm:$0xff]
    %v44 = vld [vmem:[%s1 + $0xa8] sm:$0xff]
    %v45 = vld [vmem:[%s1 + $0xb0] sm:$0xff]
    %v46 = vld [vmem:[%s1 + $0xb8] sm:$0xff]
    %vm47 = vcmask 261120
    %v49 = vsel %vm47, %v21, 0
    %51 = vmatprep.subr.mxu0 0.0
    %52 = vmatpush1.msra.mxu0 0.0
    %53 = vmatprep.subr.mxu0 0.0
    %54 = vmatpush1.msra.mxu0 0.0
    %55 = vmatprep.subr.mxu0 0.0
    %56 = vmatpush1.msra.mxu0 0.0
    %57 = vmatprep.subr.mxu0 0.0
    %58 = vmatpush1.msra.mxu0 0.0
    %59 = vmatprep.subr.mxu0 0.0
    %60 = vmatpush1.msra.mxu0 0.0
    %61 = vmatprep.subr.mxu0 0.0
    %62 = vmatpush1.msra.mxu0 0.0
    %63 = vmatprep.subr.mxu0 0.0
    %64 = vmatpush1.msra.mxu0 0.0
    %65 = vmatprep.subr.mxu0 0.0
    %66 = vmatpush1.msra.mxu0 0.0
    %67 = vmatprep.subr.mxu0 0.0
    %68 = vmatpush1.msra.mxu0 0.0
    %69 = vmatprep.subr.mxu0 0.0
    %70 = vmatpush1.msra.mxu0 0.0
    %71 = vmatprep.subr.mxu0 0.0
    %72 = vmatpush1.msra.mxu0 0.0
    %73 = vmatprep.subr.mxu0 0.0
    %74 = vmatpush1.msra.mxu0 0.0
    %75 = vmatprep.subr.mxu0 %v42
    %76 = vmatpush1.msra.mxu0 %v41
    %77 = vmatprep.subr.mxu0 %v36
    %78 = vmatpush1.msra.mxu0 %v35
    %79 = vmatprep.subr.mxu0 %v30
    %80 = vmatpush1.msra.mxu0 %v29
    %81 = vmatprep.subr.mxu0 %v24
    %82 = vmatpush1.msra.mxu0 %v23
    %83 = vmatprep.subr.mxu0 0.0
    %84 = vmatpush2.msra.mxu0 0.0
    %85 = vmatprep.subr.mxu0 0.0
    %86 = vmatpush2.msra.mxu0 0.0
    %87 = vmatprep.subr.mxu0 0.0
    %88 = vmatpush2.msra.mxu0 0.0
    %89 = vmatprep.subr.mxu0 0.0
    %90 = vmatpush2.msra.mxu0 0.0
    %91 = vmatprep.subr.mxu0 0.0
    %92 = vmatpush2.msra.mxu0 0.0
    %93 = vmatprep.subr.mxu0 0.0
    %94 = vmatpush2.msra.mxu0 0.0
    %95 = vmatprep.subr.mxu0 0.0
    %96 = vmatpush2.msra.mxu0 0.0
    %97 = vmatprep.subr.mxu0 0.0
    %98 = vmatpush2.msra.mxu0 0.0
    %99 = vmatprep.subr.mxu0 0.0
    %100 = vmatpush2.msra.mxu0 0.0
    %101 = vmatprep.subr.mxu0 0.0
    %102 = vmatpush2.msra.mxu0 0.0
    %103 = vmatprep.subr.mxu0 0.0
    %104 = vmatpush2.msra.mxu0 0.0
    %105 = vmatprep.subr.mxu0 0.0
    %106 = vmatpush2.msra.mxu0 0.0
    %107 = vmatprep.subr.mxu0 0.0
    %108 = vmatpush2.msra.mxu0 0.0
    %109 = vmatprep.subr.mxu0 0.0
    %110 = vmatpush2.msra.mxu0 0.0
    %111 = vmatprep.subr.mxu0 0.0
    %112 = vmatpush2.msra.mxu0 0.0
    %113 = vmatprep.subr.mxu0 0.0
    %114 = vmatpush2.msra.mxu0 0.0
    %115 = vmatprep.mubr.f32.mxu0 0.0
    %116 = vmatmul.mubr.f32.gmra.mxu0 %v49
    %v117 = vpop.f32.mrf.mxu0
    %v118 = vadd.f32 0.0, %v117
    %v119 = vpop.f32.mrf.mxu0
    %v120 = vadd.f32 0.0, %v119
    %121 = vdwg.mxu0
    %122 = vmatprep.subr.mxu0 0.0
    %123 = vmatpush1.msra.mxu0 0.0
    %124 = vmatprep.subr.mxu0 0.0
    %125 = vmatpush1.msra.mxu0 0.0
    %126 = vmatprep.subr.mxu0 0.0
    %127 = vmatpush1.msra.mxu0 0.0
    %128 = vmatprep.subr.mxu0 0.0
    %129 = vmatpush1.msra.mxu0 0.0
    %130 = vmatprep.subr.mxu0 0.0
    %131 = vmatpush1.msra.mxu0 0.0
    %132 = vmatprep.subr.mxu0 0.0
    %133 = vmatpush1.msra.mxu0 0.0
    %134 = vmatprep.subr.mxu0 0.0
    %135 = vmatpush1.msra.mxu0 0.0
    %136 = vmatprep.subr.mxu0 0.0
    %137 = vmatpush1.msra.mxu0 0.0
    %138 = vmatprep.subr.mxu0 0.0
    %139 = vmatpush1.msra.mxu0 0.0
    %140 = vmatprep.subr.mxu0 0.0
    %141 = vmatpush1.msra.mxu0 0.0
    %142 = vmatprep.subr.mxu0 0.0
    %143 = vmatpush1.msra.mxu0 0.0
    %144 = vmatprep.subr.mxu0 0.0
    %145 = vmatpush1.msra.mxu0 0.0
    %146 = vmatprep.subr.mxu0 %v44
    %147 = vmatpush1.msra.mxu0 %v43
    %148 = vmatprep.subr.mxu0 %v38
    %149 = vmatpush1.msra.mxu0 %v37
    %150 = vmatprep.subr.mxu0 %v32
    %151 = vmatpush1.msra.mxu0 %v31
    %152 = vmatprep.subr.mxu0 %v26
    %153 = vmatpush1.msra.mxu0 %v25
    %154 = vmatprep.subr.mxu0 0.0
    %155 = vmatpush2.msra.mxu0 0.0
    %156 = vmatprep.subr.mxu0 0.0
    %157 = vmatpush2.msra.mxu0 0.0
    %158 = vmatprep.subr.mxu0 0.0
    %159 = vmatpush2.msra.mxu0 0.0
    %160 = vmatprep.subr.mxu0 0.0
    %161 = vmatpush2.msra.mxu0 0.0
    %162 = vmatprep.subr.mxu0 0.0
    %163 = vmatpush2.msra.mxu0 0.0
    %164 = vmatprep.subr.mxu0 0.0
    %165 = vmatpush2.msra.mxu0 0.0
    %166 = vmatprep.subr.mxu0 0.0
    %167 = vmatpush2.msra.mxu0 0.0
    %168 = vmatprep.subr.mxu0 0.0
    %169 = vmatpush2.msra.mxu0 0.0
    %170 = vmatprep.subr.mxu0 0.0
    %171 = vmatpush2.msra.mxu0 0.0
    %172 = vmatprep.subr.mxu0 0.0
    %173 = vmatpush2.msra.mxu0 0.0
    %174 = vmatprep.subr.mxu0 0.0
    %175 = vmatpush2.msra.mxu0 0.0
    %176 = vmatprep.subr.mxu0 0.0
    %177 = vmatpush2.msra.mxu0 0.0
    %178 = vmatprep.subr.mxu0 0.0
    %179 = vmatpush2.msra.mxu0 0.0
    %180 = vmatprep.subr.mxu0 0.0
    %181 = vmatpush2.msra.mxu0 0.0
    %182 = vmatprep.subr.mxu0 0.0
    %183 = vmatpush2.msra.mxu0 0.0
    %184 = vmatprep.subr.mxu0 0.0
    %185 = vmatpush2.msra.mxu0 0.0
    %186 = vmatprep.mubr.f32.mxu0 0.0
    %187 = vmatmul.mubr.f32.gmra.mxu0 %v49
    %v188 = vpop.f32.mrf.mxu0
    %v189 = vadd.f32 0.0, %v188
    %v190 = vpop.f32.mrf.mxu0
    %v191 = vadd.f32 0.0, %v190
    %192 = vdwg.mxu0
    %193 = vmatprep.subr.mxu0 0.0
    %194 = vmatpush1.msra.mxu0 0.0
    %195 = vmatprep.subr.mxu0 0.0
    %196 = vmatpush1.msra.mxu0 0.0
    %197 = vmatprep.subr.mxu0 0.0
    %198 = vmatpush1.msra.mxu0 0.0
    %199 = vmatprep.subr.mxu0 0.0
    %200 = vmatpush1.msra.mxu0 0.0
    %201 = vmatprep.subr.mxu0 0.0
    %202 = vmatpush1.msra.mxu0 0.0
    %203 = vmatprep.subr.mxu0 0.0
    %204 = vmatpush1.msra.mxu0 0.0
    %205 = vmatprep.subr.mxu0 0.0
    %206 = vmatpush1.msra.mxu0 0.0
    %207 = vmatprep.subr.mxu0 0.0
    %208 = vmatpush1.msra.mxu0 0.0
    %209 = vmatprep.subr.mxu0 0.0
    %210 = vmatpush1.msra.mxu0 0.0
    %211 = vmatprep.subr.mxu0 0.0
    %212 = vmatpush1.msra.mxu0 0.0
    %213 = vmatprep.subr.mxu0 0.0
    %214 = vmatpush1.msra.mxu0 0.0
    %215 = vmatprep.subr.mxu0 0.0
    %216 = vmatpush1.msra.mxu0 0.0
    %217 = vmatprep.subr.mxu0 %v46
    %218 = vmatpush1.msra.mxu0 %v45
    %219 = vmatprep.subr.mxu0 %v40
    %220 = vmatpush1.msra.mxu0 %v39
    %221 = vmatprep.subr.mxu0 %v34
    %222 = vmatpush1.msra.mxu0 %v33
    %223 = vmatprep.subr.mxu0 %v28
    %224 = vmatpush1.msra.mxu0 %v27
    %225 = vmatprep.subr.mxu0 0.0
    %226 = vmatpush2.msra.mxu0 0.0
    %227 = vmatprep.subr.mxu0 0.0
    %228 = vmatpush2.msra.mxu0 0.0
    %229 = vmatprep.subr.mxu0 0.0
    %230 = vmatpush2.msra.mxu0 0.0
    %231 = vmatprep.subr.mxu0 0.0
    %232 = vmatpush2.msra.mxu0 0.0
    %233 = vmatprep.subr.mxu0 0.0
    %234 = vmatpush2.msra.mxu0 0.0
    %235 = vmatprep.subr.mxu0 0.0
    %236 = vmatpush2.msra.mxu0 0.0
    %237 = vmatprep.subr.mxu0 0.0
    %238 = vmatpush2.msra.mxu0 0.0
    %239 = vmatprep.subr.mxu0 0.0
    %240 = vmatpush2.msra.mxu0 0.0
    %241 = vmatprep.subr.mxu0 0.0
    %242 = vmatpush2.msra.mxu0 0.0
    %243 = vmatprep.subr.mxu0 0.0
    %244 = vmatpush2.msra.mxu0 0.0
    %245 = vmatprep.subr.mxu0 0.0
    %246 = vmatpush2.msra.mxu0 0.0
    %247 = vmatprep.subr.mxu0 0.0
    %248 = vmatpush2.msra.mxu0 0.0
    %249 = vmatprep.subr.mxu0 0.0
    %250 = vmatpush2.msra.mxu0 0.0
    %251 = vmatprep.subr.mxu0 0.0
    %252 = vmatpush2.msra.mxu0 0.0
    %253 = vmatprep.subr.mxu0 0.0
    %254 = vmatpush2.msra.mxu0 0.0
    %255 = vmatprep.subr.mxu0 0.0
    %256 = vmatpush2.msra.mxu0 0.0
    %257 = vmatprep.mubr.f32.mxu0 0.0
    %258 = vmatmul.mubr.f32.gmra.mxu0 %v49
    %v259 = vpop.f32.mrf.mxu0
    %v260 = vadd.f32 0.0, %v259
    %v261 = vpop.f32.mrf.mxu0
    %v262 = vadd.f32 0.0, %v261
    %263 = vdwg.mxu0
    %v264 = vld [vmem:[%s2] sm:$0xff]
    %v265 = vld [vmem:[%s2 + $0x8] sm:$0xff]
    %v266 = vld [vmem:[%s2 + $0x10] sm:$0xff]
    %v267 = vld [vmem:[%s2 + $0x18] sm:$0xff]
    %v268 = vld [vmem:[%s2 + $0x20] sm:$0xff]
    %v269 = vld [vmem:[%s2 + $0x28] sm:$0xff]
    %v270 = vld [vmem:[%s2 + $0x30] sm:$0xff]
    %v271 = vld [vmem:[%s2 + $0x38] sm:$0xff]
    %v272 = vld [vmem:[%s2 + $0x40] sm:$0xff]
    %v273 = vld [vmem:[%s2 + $0x48] sm:$0xff]
    %v274 = vld [vmem:[%s2 + $0x50] sm:$0xff]
    %v275 = vld [vmem:[%s2 + $0x58] sm:$0xff]
    %v276 = vld [vmem:[%s2 + $0x60] sm:$0xff]
    %v277 = vld [vmem:[%s2 + $0x68] sm:$0xff]
    %v278 = vld [vmem:[%s2 + $0x70] sm:$0xff]
    %v279 = vld [vmem:[%s2 + $0x78] sm:$0xff]
    %v280 = vld [vmem:[%s2 + $0x80] sm:$0xff]
    %v281 = vld [vmem:[%s2 + $0x88] sm:$0xff]
    %v282 = vld [vmem:[%s2 + $0x90] sm:$0xff]
    %v283 = vld [vmem:[%s2 + $0x98] sm:$0xff]
    %v284 = vld [vmem:[%s2 + $0xa0] sm:$0xff]
    %v285 = vld [vmem:[%s2 + $0xa8] sm:$0xff]
    %v286 = vld [vmem:[%s2 + $0xb0] sm:$0xff]
    %v287 = vld [vmem:[%s2 + $0xb8] sm:$0xff]
    %v288 = vld [vmem:[%s2 + $0xc0] sm:$0xff]
    %v289 = vld [vmem:[%s2 + $0xc8] sm:$0xff]
    %v290 = vld [vmem:[%s2 + $0xd0] sm:$0xff]
    %v291 = vld [vmem:[%s2 + $0xd8] sm:$0xff]
    %v292 = vld [vmem:[%s2 + $0xe0] sm:$0xff]
    %v293 = vld [vmem:[%s2 + $0xe8] sm:$0xff]
    %v294 = vld [vmem:[%s2 + $0xf0] sm:$0xff]
    %v295 = vld [vmem:[%s2 + $0xf8] sm:$0xff]
    %v296 = vld [vmem:[%s3] sm:$0xff]
    %v297 = vld [vmem:[%s3 + $0x8] sm:$0xff]
    %v298 = vmul.f32 %v21, %v118
    %v299 = vmul.f32 %v22, %v120
    %300 = vmatprep.subr.mxu0 0.0
    %301 = vmatpush1.msra.mxu0 %v279
    %302 = vmatprep.subr.mxu0 0.0
    %303 = vmatpush1.msra.mxu0 %v278
    %304 = vmatprep.subr.mxu0 0.0
    %305 = vmatpush1.msra.mxu0 %v277
    %306 = vmatprep.subr.mxu0 0.0
    %307 = vmatpush1.msra.mxu0 %v276
    %308 = vmatprep.subr.mxu0 0.0
    %309 = vmatpush1.msra.mxu0 %v275
    %310 = vmatprep.subr.mxu0 0.0
    %311 = vmatpush1.msra.mxu0 %v274
    %312 = vmatprep.subr.mxu0 0.0
    %313 = vmatpush1.msra.mxu0 %v273
    %314 = vmatprep.subr.mxu0 0.0
    %315 = vmatpush1.msra.mxu0 %v272
    %316 = vmatprep.subr.mxu0 0.0
    %317 = vmatpush1.msra.mxu0 %v271
    %318 = vmatprep.subr.mxu0 0.0
    %319 = vmatpush1.msra.mxu0 %v270
    %320 = vmatprep.subr.mxu0 0.0
    %321 = vmatpush1.msra.mxu0 %v269
    %322 = vmatprep.subr.mxu0 0.0
    %323 = vmatpush1.msra.mxu0 %v268
    %324 = vmatprep.subr.mxu0 0.0
    %325 = vmatpush1.msra.mxu0 %v267
    %326 = vmatprep.subr.mxu0 0.0
    %327 = vmatpush1.msra.mxu0 %v266
    %328 = vmatprep.subr.mxu0 0.0
    %329 = vmatpush1.msra.mxu0 %v265
    %330 = vmatprep.subr.mxu0 0.0
    %331 = vmatpush1.msra.mxu0 %v264
    %332 = vmatprep.subr.mxu0 0.0
    %333 = vmatpush2.msra.mxu0 %v295
    %334 = vmatprep.subr.mxu0 0.0
    %335 = vmatpush2.msra.mxu0 %v294
    %336 = vmatprep.subr.mxu0 0.0
    %337 = vmatpush2.msra.mxu0 %v293
    %338 = vmatprep.subr.mxu0 0.0
    %339 = vmatpush2.msra.mxu0 %v292
    %340 = vmatprep.subr.mxu0 0.0
    %341 = vmatpush2.msra.mxu0 %v291
    %342 = vmatprep.subr.mxu0 0.0
    %343 = vmatpush2.msra.mxu0 %v290
    %344 = vmatprep.subr.mxu0 0.0
    %345 = vmatpush2.msra.mxu0 %v289
    %346 = vmatprep.subr.mxu0 0.0
    %347 = vmatpush2.msra.mxu0 %v288
    %348 = vmatprep.subr.mxu0 0.0
    %349 = vmatpush2.msra.mxu0 %v287
    %350 = vmatprep.subr.mxu0 0.0
    %351 = vmatpush2.msra.mxu0 %v286
    %352 = vmatprep.subr.mxu0 0.0
    %353 = vmatpush2.msra.mxu0 %v285
    %354 = vmatprep.subr.mxu0 0.0
    %355 = vmatpush2.msra.mxu0 %v284
    %356 = vmatprep.subr.mxu0 0.0
    %357 = vmatpush2.msra.mxu0 %v283
    %358 = vmatprep.subr.mxu0 0.0
    %359 = vmatpush2.msra.mxu0 %v282
    %360 = vmatprep.subr.mxu0 0.0
    %361 = vmatpush2.msra.mxu0 %v281
    %362 = vmatprep.subr.mxu0 0.0
    %363 = vmatpush2.msra.mxu0 %v280
    %364 = vmatprep.mubr.f32.mxu0 %v299
    %365 = vmatmul.mubr.f32.gmra.mxu0 %v298
    %v366 = vpop.f32.mrf.mxu0
    %v367 = vadd.f32 0.0, %v366
    %v368 = vpop.f32.mrf.mxu0
    %369 = vdwg.mxu0
    %vm370 = vcmask 64512
    %v371 = vsel %vm370, %v367, -inf
    %372 = vmax.xlane.f32.xlu0 %v371
    %v373 = vpop.xlane.xlu0 %372
    %v374 = vsub.f32 %v367, %v373
    %v375 = vmul.f32 %v374, 1.442695
    %v376 = vpow.pop %v375
    %v377 = vsel %vm370, %v376, 0.0
    %378 = vadd.xlane.f32.xlu0 %v377
    %v379 = vpop.xlane.xlu0 %378
    %v380 = vrcp.pop %v379
    %v381 = vmul.f32 %v376, %v380
    %v383 = vsel %vm370, %v381, 0
    %385 = vmatprep.subr.mxu0 0.0
    %386 = vmatpush1.msra.mxu0 0.0
    %387 = vmatprep.subr.mxu0 0.0
    %388 = vmatpush1.msra.mxu0 0.0
    %389 = vmatprep.subr.mxu0 0.0
    %390 = vmatpush1.msra.mxu0 0.0
    %391 = vmatprep.subr.mxu0 0.0
    %392 = vmatpush1.msra.mxu0 0.0
    %393 = vmatprep.subr.mxu0 0.0
    %394 = vmatpush1.msra.mxu0 0.0
    %395 = vmatprep.subr.mxu0 0.0
    %396 = vmatpush1.msra.mxu0 0.0
    %397 = vmatprep.subr.mxu0 0.0
    %398 = vmatpush1.msra.mxu0 0.0
    %399 = vmatprep.subr.mxu0 0.0
    %400 = vmatpush1.msra.mxu0 0.0
    %401 = vmatprep.subr.mxu0 0.0
    %402 = vmatpush1.msra.mxu0 0.0
    %403 = vmatprep.subr.mxu0 0.0
    %404 = vmatpush1.msra.mxu0 0.0
    %405 = vmatprep.subr.mxu0 0.0
    %406 = vmatpush1.msra.mxu0 0.0
    %407 = vmatprep.subr.mxu0 0.0
    %408 = vmatpush1.msra.mxu0 0.0
    %409 = vmatprep.subr.mxu0 0.0
    %410 = vmatpush1.msra.mxu0 0.0
    %411 = vmatprep.subr.mxu0 0.0
    %412 = vmatpush1.msra.mxu0 0.0
    %413 = vmatprep.subr.mxu0 0.0
    %414 = vmatpush1.msra.mxu0 0.0
    %415 = vmatprep.subr.mxu0 %v297
    %416 = vmatpush1.msra.mxu0 %v296
    %417 = vmatprep.subr.mxu0 0.0
    %418 = vmatpush2.msra.mxu0 0.0
    %419 = vmatprep.subr.mxu0 0.0
    %420 = vmatpush2.msra.mxu0 0.0
    %421 = vmatprep.subr.mxu0 0.0
    %422 = vmatpush2.msra.mxu0 0.0
    %423 = vmatprep.subr.mxu0 0.0
    %424 = vmatpush2.msra.mxu0 0.0
    %425 = vmatprep.subr.mxu0 0.0
    %426 = vmatpush2.msra.mxu0 0.0
    %427 = vmatprep.subr.mxu0 0.0
    %428 = vmatpush2.msra.mxu0 0.0
    %429 = vmatprep.subr.mxu0 0.0
    %430 = vmatpush2.msra.mxu0 0.0
    %431 = vmatprep.subr.mxu0 0.0
    %432 = vmatpush2.msra.mxu0 0.0
    %433 = vmatprep.subr.mxu0 0.0
    %434 = vmatpush2.msra.mxu0 0.0
    %435 = vmatprep.subr.mxu0 0.0
    %436 = vmatpush2.msra.mxu0 0.0
    %437 = vmatprep.subr.mxu0 0.0
    %438 = vmatpush2.msra.mxu0 0.0
    %439 = vmatprep.subr.mxu0 0.0
    %440 = vmatpush2.msra.mxu0 0.0
    %441 = vmatprep.subr.mxu0 0.0
    %442 = vmatpush2.msra.mxu0 0.0
    %443 = vmatprep.subr.mxu0 0.0
    %444 = vmatpush2.msra.mxu0 0.0
    %445 = vmatprep.subr.mxu0 0.0
    %446 = vmatpush2.msra.mxu0 0.0
    %447 = vmatprep.subr.mxu0 0.0
    %448 = vmatpush2.msra.mxu0 0.0
    %449 = vmatprep.mubr.f32.mxu0 0.0
    %450 = vmatmul.mubr.f32.gmra.mxu0 %v383
    %v451 = vpop.f32.mrf.mxu0
    %v452 = vadd.f32 0.0, %v451
    %v453 = vpop.f32.mrf.mxu0
    %v454 = vadd.f32 0.0, %v453
    %455 = vdwg.mxu0
    %v456 = vmul.f32 %v21, %v452
    %v457 = vmul.f32 %v22, %v454
    %v458 = vld [vmem:[%s4] sm:$0xff]
    %v459 = vld [vmem:[%s4 + $0x8] sm:$0xff]
    %v460 = vld [vmem:[%s4 + $0x10] sm:$0xff]
    %v461 = vld [vmem:[%s4 + $0x18] sm:$0xff]
    %v462 = vld [vmem:[%s4 + $0x20] sm:$0xff]
    %v463 = vld [vmem:[%s4 + $0x28] sm:$0xff]
    %v464 = vld [vmem:[%s4 + $0x30] sm:$0xff]
    %v465 = vld [vmem:[%s4 + $0x38] sm:$0xff]
    %v466 = vld [vmem:[%s4 + $0x40] sm:$0xff]
    %v467 = vld [vmem:[%s4 + $0x48] sm:$0xff]
    %v468 = vld [vmem:[%s4 + $0x50] sm:$0xff]
    %v469 = vld [vmem:[%s4 + $0x58] sm:$0xff]
    %v470 = vld [vmem:[%s4 + $0x60] sm:$0xff]
    %v471 = vld [vmem:[%s4 + $0x68] sm:$0xff]
    %v472 = vld [vmem:[%s4 + $0x70] sm:$0xff]
    %v473 = vld [vmem:[%s4 + $0x78] sm:$0xff]
    %v474 = vld [vmem:[%s4 + $0x80] sm:$0xff]
    %v475 = vld [vmem:[%s4 + $0x88] sm:$0xff]
    %v476 = vld [vmem:[%s4 + $0x90] sm:$0xff]
    %v477 = vld [vmem:[%s4 + $0x98] sm:$0xff]
    %v478 = vld [vmem:[%s4 + $0xa0] sm:$0xff]
    %v479 = vld [vmem:[%s4 + $0xa8] sm:$0xff]
    %v480 = vld [vmem:[%s4 + $0xb0] sm:$0xff]
    %v481 = vld [vmem:[%s4 + $0xb8] sm:$0xff]
    %v482 = vld [vmem:[%s4 + $0xc0] sm:$0xff]
    %v483 = vld [vmem:[%s4 + $0xc8] sm:$0xff]
    %v484 = vld [vmem:[%s4 + $0xd0] sm:$0xff]
    %v485 = vld [vmem:[%s4 + $0xd8] sm:$0xff]
    %v486 = vld [vmem:[%s4 + $0xe0] sm:$0xff]
    %v487 = vld [vmem:[%s4 + $0xe8] sm:$0xff]
    %v488 = vld [vmem:[%s4 + $0xf0] sm:$0xff]
    %v489 = vld [vmem:[%s4 + $0xf8] sm:$0xff]
    %v490 = vmul.f32 %v21, %v189
    %v491 = vmul.f32 %v22, %v191
    %492 = vmatprep.subr.mxu0 0.0
    %493 = vmatpush1.msra.mxu0 %v279
    %494 = vmatprep.subr.mxu0 0.0
    %495 = vmatpush1.msra.mxu0 %v278
    %496 = vmatprep.subr.mxu0 0.0
    %497 = vmatpush1.msra.mxu0 %v277
    %498 = vmatprep.subr.mxu0 0.0
    %499 = vmatpush1.msra.mxu0 %v276
    %500 = vmatprep.subr.mxu0 0.0
    %501 = vmatpush1.msra.mxu0 %v275
    %502 = vmatprep.subr.mxu0 0.0
    %503 = vmatpush1.msra.mxu0 %v274
    %504 = vmatprep.subr.mxu0 0.0
    %505 = vmatpush1.msra.mxu0 %v273
    %506 = vmatprep.subr.mxu0 0.0
    %507 = vmatpush1.msra.mxu0 %v272
    %508 = vmatprep.subr.mxu0 0.0
    %509 = vmatpush1.msra.mxu0 %v271
    %510 = vmatprep.subr.mxu0 0.0
    %511 = vmatpush1.msra.mxu0 %v270
    %512 = vmatprep.subr.mxu0 0.0
    %513 = vmatpush1.msra.mxu0 %v269
    %514 = vmatprep.subr.mxu0 0.0
    %515 = vmatpush1.msra.mxu0 %v268
    %516 = vmatprep.subr.mxu0 0.0
    %517 = vmatpush1.msra.mxu0 %v267
    %518 = vmatprep.subr.mxu0 0.0
    %519 = vmatpush1.msra.mxu0 %v266
    %520 = vmatprep.subr.mxu0 0.0
    %521 = vmatpush1.msra.mxu0 %v265
    %522 = vmatprep.subr.mxu0 0.0
    %523 = vmatpush1.msra.mxu0 %v264
    %524 = vmatprep.subr.mxu0 0.0
    %525 = vmatpush2.msra.mxu0 %v295
    %526 = vmatprep.subr.mxu0 0.0
    %527 = vmatpush2.msra.mxu0 %v294
    %528 = vmatprep.subr.mxu0 0.0
    %529 = vmatpush2.msra.mxu0 %v293
    %530 = vmatprep.subr.mxu0 0.0
    %531 = vmatpush2.msra.mxu0 %v292
    %532 = vmatprep.subr.mxu0 0.0
    %533 = vmatpush2.msra.mxu0 %v291
    %534 = vmatprep.subr.mxu0 0.0
    %535 = vmatpush2.msra.mxu0 %v290
    %536 = vmatprep.subr.mxu0 0.0
    %537 = vmatpush2.msra.mxu0 %v289
    %538 = vmatprep.subr.mxu0 0.0
    %539 = vmatpush2.msra.mxu0 %v288
    %540 = vmatprep.subr.mxu0 0.0
    %541 = vmatpush2.msra.mxu0 %v287
    %542 = vmatprep.subr.mxu0 0.0
    %543 = vmatpush2.msra.mxu0 %v286
    %544 = vmatprep.subr.mxu0 0.0
    %545 = vmatpush2.msra.mxu0 %v285
    %546 = vmatprep.subr.mxu0 0.0
    %547 = vmatpush2.msra.mxu0 %v284
    %548 = vmatprep.subr.mxu0 0.0
    %549 = vmatpush2.msra.mxu0 %v283
    %550 = vmatprep.subr.mxu0 0.0
    %551 = vmatpush2.msra.mxu0 %v282
    %552 = vmatprep.subr.mxu0 0.0
    %553 = vmatpush2.msra.mxu0 %v281
    %554 = vmatprep.subr.mxu0 0.0
    %555 = vmatpush2.msra.mxu0 %v280
    %556 = vmatprep.mubr.f32.mxu0 %v491
    %557 = vmatmul.mubr.f32.gmra.mxu0 %v490
    %v558 = vpop.f32.mrf.mxu0
    %v559 = vadd.f32 0.0, %v558
    %v560 = vpop.f32.mrf.mxu0
    %561 = vdwg.mxu0
    %v562 = vsel %vm370, %v559, -inf
    %563 = vmax.xlane.f32.xlu0 %v562
    %v564 = vpop.xlane.xlu0 %563
    %v565 = vsub.f32 %v559, %v564
    %v566 = vmul.f32 %v565, 1.442695
    %v567 = vpow.pop %v566
    %v568 = vsel %vm370, %v567, 0.0
    %569 = vadd.xlane.f32.xlu0 %v568
    %v570 = vpop.xlane.xlu0 %569
    %v571 = vrcp.pop %v570
    %v572 = vmul.f32 %v567, %v571
    %v574 = vsel %vm370, %v572, 0
    %576 = vmatprep.subr.mxu0 0.0
    %577 = vmatpush1.msra.mxu0 0.0
    %578 = vmatprep.subr.mxu0 0.0
    %579 = vmatpush1.msra.mxu0 0.0
    %580 = vmatprep.subr.mxu0 0.0
    %581 = vmatpush1.msra.mxu0 0.0
    %582 = vmatprep.subr.mxu0 0.0
    %583 = vmatpush1.msra.mxu0 0.0
    %584 = vmatprep.subr.mxu0 0.0
    %585 = vmatpush1.msra.mxu0 0.0
    %586 = vmatprep.subr.mxu0 0.0
    %587 = vmatpush1.msra.mxu0 0.0
    %588 = vmatprep.subr.mxu0 0.0
    %589 = vmatpush1.msra.mxu0 0.0
    %590 = vmatprep.subr.mxu0 0.0
    %591 = vmatpush1.msra.mxu0 0.0
    %592 = vmatprep.subr.mxu0 0.0
    %593 = vmatpush1.msra.mxu0 0.0
    %594 = vmatprep.subr.mxu0 0.0
    %595 = vmatpush1.msra.mxu0 0.0
    %596 = vmatprep.subr.mxu0 0.0
    %597 = vmatpush1.msra.mxu0 0.0
    %598 = vmatprep.subr.mxu0 0.0
    %599 = vmatpush1.msra.mxu0 0.0
    %600 = vmatprep.subr.mxu0 0.0
    %601 = vmatpush1.msra.mxu0 0.0
    %602 = vmatprep.subr.mxu0 0.0
    %603 = vmatpush1.msra.mxu0 0.0
    %604 = vmatprep.subr.mxu0 0.0
    %605 = vmatpush1.msra.mxu0 0.0
    %606 = vmatprep.subr.mxu0 %v297
    %607 = vmatpush1.msra.mxu0 %v296
    %608 = vmatprep.subr.mxu0 0.0
    %609 = vmatpush2.msra.mxu0 0.0
    %610 = vmatprep.subr.mxu0 0.0
    %611 = vmatpush2.msra.mxu0 0.0
    %612 = vmatprep.subr.mxu0 0.0
    %613 = vmatpush2.msra.mxu0 0.0
    %614 = vmatprep.subr.mxu0 0.0
    %615 = vmatpush2.msra.mxu0 0.0
    %616 = vmatprep.subr.mxu0 0.0
    %617 = vmatpush2.msra.mxu0 0.0
    %618 = vmatprep.subr.mxu0 0.0
    %619 = vmatpush2.msra.mxu0 0.0
    %620 = vmatprep.subr.mxu0 0.0
    %621 = vmatpush2.msra.mxu0 0.0
    %622 = vmatprep.subr.mxu0 0.0
    %623 = vmatpush2.msra.mxu0 0.0
    %624 = vmatprep.subr.mxu0 0.0
    %625 = vmatpush2.msra.mxu0 0.0
    %626 = vmatprep.subr.mxu0 0.0
    %627 = vmatpush2.msra.mxu0 0.0
    %628 = vmatprep.subr.mxu0 0.0
    %629 = vmatpush2.msra.mxu0 0.0
    %630 = vmatprep.subr.mxu0 0.0
    %631 = vmatpush2.msra.mxu0 0.0
    %632 = vmatprep.subr.mxu0 0.0
    %633 = vmatpush2.msra.mxu0 0.0
    %634 = vmatprep.subr.mxu0 0.0
    %635 = vmatpush2.msra.mxu0 0.0
    %636 = vmatprep.subr.mxu0 0.0
    %637 = vmatpush2.msra.mxu0 0.0
    %638 = vmatprep.subr.mxu0 0.0
    %639 = vmatpush2.msra.mxu0 0.0
    %640 = vmatprep.mubr.f32.mxu0 0.0
    %641 = vmatmul.mubr.f32.gmra.mxu0 %v574
    %v642 = vpop.f32.mrf.mxu0
    %v643 = vadd.f32 0.0, %v642
    %v644 = vpop.f32.mrf.mxu0
    %v645 = vadd.f32 0.0, %v644
    %646 = vdwg.mxu0
    %v647 = vmul.f32 %v21, %v643
    %v648 = vmul.f32 %v22, %v645
    %s649 = scalar_lea.vmem %s4, 256
    %v650 = vld [vmem:[%s649] sm:$0xff]
    %v651 = vld [vmem:[%s649 + $0x8] sm:$0xff]
    %v652 = vld [vmem:[%s649 + $0x10] sm:$0xff]
    %v653 = vld [vmem:[%s649 + $0x18] sm:$0xff]
    %v654 = vld [vmem:[%s649 + $0x20] sm:$0xff]
    %v655 = vld [vmem:[%s649 + $0x28] sm:$0xff]
    %v656 = vld [vmem:[%s649 + $0x30] sm:$0xff]
    %v657 = vld [vmem:[%s649 + $0x38] sm:$0xff]
    %v658 = vld [vmem:[%s649 + $0x40] sm:$0xff]
    %v659 = vld [vmem:[%s649 + $0x48] sm:$0xff]
    %v660 = vld [vmem:[%s649 + $0x50] sm:$0xff]
    %v661 = vld [vmem:[%s649 + $0x58] sm:$0xff]
    %v662 = vld [vmem:[%s649 + $0x60] sm:$0xff]
    %v663 = vld [vmem:[%s649 + $0x68] sm:$0xff]
    %v664 = vld [vmem:[%s649 + $0x70] sm:$0xff]
    %v665 = vld [vmem:[%s649 + $0x78] sm:$0xff]
    %v666 = vld [vmem:[%s649 + $0x80] sm:$0xff]
    %v667 = vld [vmem:[%s649 + $0x88] sm:$0xff]
    %v668 = vld [vmem:[%s649 + $0x90] sm:$0xff]
    %v669 = vld [vmem:[%s649 + $0x98] sm:$0xff]
    %v670 = vld [vmem:[%s649 + $0xa0] sm:$0xff]
    %v671 = vld [vmem:[%s649 + $0xa8] sm:$0xff]
    %v672 = vld [vmem:[%s649 + $0xb0] sm:$0xff]
    %v673 = vld [vmem:[%s649 + $0xb8] sm:$0xff]
    %v674 = vld [vmem:[%s649 + $0xc0] sm:$0xff]
    %v675 = vld [vmem:[%s649 + $0xc8] sm:$0xff]
    %v676 = vld [vmem:[%s649 + $0xd0] sm:$0xff]
    %v677 = vld [vmem:[%s649 + $0xd8] sm:$0xff]
    %v678 = vld [vmem:[%s649 + $0xe0] sm:$0xff]
    %v679 = vld [vmem:[%s649 + $0xe8] sm:$0xff]
    %v680 = vld [vmem:[%s649 + $0xf0] sm:$0xff]
    %v681 = vld [vmem:[%s649 + $0xf8] sm:$0xff]
    %682 = vmatprep.subr.mxu0 0.0
    %683 = vmatpush1.msra.mxu0 %v665
    %684 = vmatprep.subr.mxu0 0.0
    %685 = vmatpush1.msra.mxu0 %v664
    %686 = vmatprep.subr.mxu0 0.0
    %687 = vmatpush1.msra.mxu0 %v663
    %688 = vmatprep.subr.mxu0 0.0
    %689 = vmatpush1.msra.mxu0 %v662
    %690 = vmatprep.subr.mxu0 0.0
    %691 = vmatpush1.msra.mxu0 %v661
    %692 = vmatprep.subr.mxu0 0.0
    %693 = vmatpush1.msra.mxu0 %v660
    %694 = vmatprep.subr.mxu0 0.0
    %695 = vmatpush1.msra.mxu0 %v659
    %696 = vmatprep.subr.mxu0 0.0
    %697 = vmatpush1.msra.mxu0 %v658
    %698 = vmatprep.subr.mxu0 0.0
    %699 = vmatpush1.msra.mxu0 %v657
    %700 = vmatprep.subr.mxu0 0.0
    %701 = vmatpush1.msra.mxu0 %v656
    %702 = vmatprep.subr.mxu0 0.0
    %703 = vmatpush1.msra.mxu0 %v655
    %704 = vmatprep.subr.mxu0 0.0
    %705 = vmatpush1.msra.mxu0 %v654
    %706 = vmatprep.subr.mxu0 0.0
    %707 = vmatpush1.msra.mxu0 %v653
    %708 = vmatprep.subr.mxu0 0.0
    %709 = vmatpush1.msra.mxu0 %v652
    %710 = vmatprep.subr.mxu0 0.0
    %711 = vmatpush1.msra.mxu0 %v651
    %712 = vmatprep.subr.mxu0 0.0
    %713 = vmatpush1.msra.mxu0 %v650
    %714 = vmatprep.subr.mxu0 0.0
    %715 = vmatpush2.msra.mxu0 %v681
    %716 = vmatprep.subr.mxu0 0.0
    %717 = vmatpush2.msra.mxu0 %v680
    %718 = vmatprep.subr.mxu0 0.0
    %719 = vmatpush2.msra.mxu0 %v679
    %720 = vmatprep.subr.mxu0 0.0
    %721 = vmatpush2.msra.mxu0 %v678
    %722 = vmatprep.subr.mxu0 0.0
    %723 = vmatpush2.msra.mxu0 %v677
    %724 = vmatprep.subr.mxu0 0.0
    %725 = vmatpush2.msra.mxu0 %v676
    %726 = vmatprep.subr.mxu0 0.0
    %727 = vmatpush2.msra.mxu0 %v675
    %728 = vmatprep.subr.mxu0 0.0
    %729 = vmatpush2.msra.mxu0 %v674
    %730 = vmatprep.subr.mxu0 0.0
    %731 = vmatpush2.msra.mxu0 %v673
    %732 = vmatprep.subr.mxu0 0.0
    %733 = vmatpush2.msra.mxu0 %v672
    %734 = vmatprep.subr.mxu0 0.0
    %735 = vmatpush2.msra.mxu0 %v671
    %736 = vmatprep.subr.mxu0 0.0
    %737 = vmatpush2.msra.mxu0 %v670
    %738 = vmatprep.subr.mxu0 0.0
    %739 = vmatpush2.msra.mxu0 %v669
    %740 = vmatprep.subr.mxu0 0.0
    %741 = vmatpush2.msra.mxu0 %v668
    %742 = vmatprep.subr.mxu0 0.0
    %743 = vmatpush2.msra.mxu0 %v667
    %744 = vmatprep.subr.mxu0 0.0
    %745 = vmatpush2.msra.mxu0 %v666
    %746 = vmatprep.mubr.f32.mxu0 %v648
    %747 = vmatmul.mubr.f32.gmra.mxu0 %v647
    %v748 = vpop.f32.mrf.mxu0
    %v749 = vadd.f32 0.0, %v748
    %v750 = vpop.f32.mrf.mxu0
    %751 = vdwg.mxu0
    %752 = vmatprep.subr.mxu0 0.0
    %753 = vmatpush1.msra.mxu0 %v473
    %754 = vmatprep.subr.mxu0 0.0
    %755 = vmatpush1.msra.mxu0 %v472
    %756 = vmatprep.subr.mxu0 0.0
    %757 = vmatpush1.msra.mxu0 %v471
    %758 = vmatprep.subr.mxu0 0.0
    %759 = vmatpush1.msra.mxu0 %v470
    %760 = vmatprep.subr.mxu0 0.0
    %761 = vmatpush1.msra.mxu0 %v469
    %762 = vmatprep.subr.mxu0 0.0
    %763 = vmatpush1.msra.mxu0 %v468
    %764 = vmatprep.subr.mxu0 0.0
    %765 = vmatpush1.msra.mxu0 %v467
    %766 = vmatprep.subr.mxu0 0.0
    %767 = vmatpush1.msra.mxu0 %v466
    %768 = vmatprep.subr.mxu0 0.0
    %769 = vmatpush1.msra.mxu0 %v465
    %770 = vmatprep.subr.mxu0 0.0
    %771 = vmatpush1.msra.mxu0 %v464
    %772 = vmatprep.subr.mxu0 0.0
    %773 = vmatpush1.msra.mxu0 %v463
    %774 = vmatprep.subr.mxu0 0.0
    %775 = vmatpush1.msra.mxu0 %v462
    %776 = vmatprep.subr.mxu0 0.0
    %777 = vmatpush1.msra.mxu0 %v461
    %778 = vmatprep.subr.mxu0 0.0
    %779 = vmatpush1.msra.mxu0 %v460
    %780 = vmatprep.subr.mxu0 0.0
    %781 = vmatpush1.msra.mxu0 %v459
    %782 = vmatprep.subr.mxu0 0.0
    %783 = vmatpush1.msra.mxu0 %v458
    %784 = vmatprep.subr.mxu0 0.0
    %785 = vmatpush2.msra.mxu0 %v489
    %786 = vmatprep.subr.mxu0 0.0
    %787 = vmatpush2.msra.mxu0 %v488
    %788 = vmatprep.subr.mxu0 0.0
    %789 = vmatpush2.msra.mxu0 %v487
    %790 = vmatprep.subr.mxu0 0.0
    %791 = vmatpush2.msra.mxu0 %v486
    %792 = vmatprep.subr.mxu0 0.0
    %793 = vmatpush2.msra.mxu0 %v485
    %794 = vmatprep.subr.mxu0 0.0
    %795 = vmatpush2.msra.mxu0 %v484
    %796 = vmatprep.subr.mxu0 0.0
    %797 = vmatpush2.msra.mxu0 %v483
    %798 = vmatprep.subr.mxu0 0.0
    %799 = vmatpush2.msra.mxu0 %v482
    %800 = vmatprep.subr.mxu0 0.0
    %801 = vmatpush2.msra.mxu0 %v481
    %802 = vmatprep.subr.mxu0 0.0
    %803 = vmatpush2.msra.mxu0 %v480
    %804 = vmatprep.subr.mxu0 0.0
    %805 = vmatpush2.msra.mxu0 %v479
    %806 = vmatprep.subr.mxu0 0.0
    %807 = vmatpush2.msra.mxu0 %v478
    %808 = vmatprep.subr.mxu0 0.0
    %809 = vmatpush2.msra.mxu0 %v477
    %810 = vmatprep.subr.mxu0 0.0
    %811 = vmatpush2.msra.mxu0 %v476
    %812 = vmatprep.subr.mxu0 0.0
    %813 = vmatpush2.msra.mxu0 %v475
    %814 = vmatprep.subr.mxu0 0.0
    %815 = vmatpush2.msra.mxu0 %v474
    %816 = vmatprep.mubr.f32.mxu0 %v457
    %817 = vmatmul.mubr.f32.gmra.mxu0 %v456
    %v818 = vpop.f32.mrf.mxu0
    %v819 = vadd.f32 %v749, %v818
    %v820 = vpop.f32.mrf.mxu0
    %821 = vdwg.mxu0
    %v822 = vmul.f32 %v21, %v260
    %v823 = vmul.f32 %v22, %v262
    %824 = vmatprep.subr.mxu0 0.0
    %825 = vmatpush1.msra.mxu0 %v279
    %826 = vmatprep.subr.mxu0 0.0
    %827 = vmatpush1.msra.mxu0 %v278
    %828 = vmatprep.subr.mxu0 0.0
    %829 = vmatpush1.msra.mxu0 %v277
    %830 = vmatprep.subr.mxu0 0.0
    %831 = vmatpush1.msra.mxu0 %v276
    %832 = vmatprep.subr.mxu0 0.0
    %833 = vmatpush1.msra.mxu0 %v275
    %834 = vmatprep.subr.mxu0 0.0
    %835 = vmatpush1.msra.mxu0 %v274
    %836 = vmatprep.subr.mxu0 0.0
    %837 = vmatpush1.msra.mxu0 %v273
    %838 = vmatprep.subr.mxu0 0.0
    %839 = vmatpush1.msra.mxu0 %v272
    %840 = vmatprep.subr.mxu0 0.0
    %841 = vmatpush1.msra.mxu0 %v271
    %842 = vmatprep.subr.mxu0 0.0
    %843 = vmatpush1.msra.mxu0 %v270
    %844 = vmatprep.subr.mxu0 0.0
    %845 = vmatpush1.msra.mxu0 %v269
    %846 = vmatprep.subr.mxu0 0.0
    %847 = vmatpush1.msra.mxu0 %v268
    %848 = vmatprep.subr.mxu0 0.0
    %849 = vmatpush1.msra.mxu0 %v267
    %850 = vmatprep.subr.mxu0 0.0
    %851 = vmatpush1.msra.mxu0 %v266
    %852 = vmatprep.subr.mxu0 0.0
    %853 = vmatpush1.msra.mxu0 %v265
    %854 = vmatprep.subr.mxu0 0.0
    %855 = vmatpush1.msra.mxu0 %v264
    %856 = vmatprep.subr.mxu0 0.0
    %857 = vmatpush2.msra.mxu0 %v295
    %858 = vmatprep.subr.mxu0 0.0
    %859 = vmatpush2.msra.mxu0 %v294
    %860 = vmatprep.subr.mxu0 0.0
    %861 = vmatpush2.msra.mxu0 %v293
    %862 = vmatprep.subr.mxu0 0.0
    %863 = vmatpush2.msra.mxu0 %v292
    %864 = vmatprep.subr.mxu0 0.0
    %865 = vmatpush2.msra.mxu0 %v291
    %866 = vmatprep.subr.mxu0 0.0
    %867 = vmatpush2.msra.mxu0 %v290
    %868 = vmatprep.subr.mxu0 0.0
    %869 = vmatpush2.msra.mxu0 %v289
    %870 = vmatprep.subr.mxu0 0.0
    %871 = vmatpush2.msra.mxu0 %v288
    %872 = vmatprep.subr.mxu0 0.0
    %873 = vmatpush2.msra.mxu0 %v287
    %874 = vmatprep.subr.mxu0 0.0
    %875 = vmatpush2.msra.mxu0 %v286
    %876 = vmatprep.subr.mxu0 0.0
    %877 = vmatpush2.msra.mxu0 %v285
    %878 = vmatprep.subr.mxu0 0.0
    %879 = vmatpush2.msra.mxu0 %v284
    %880 = vmatprep.subr.mxu0 0.0
    %881 = vmatpush2.msra.mxu0 %v283
    %882 = vmatprep.subr.mxu0 0.0
    %883 = vmatpush2.msra.mxu0 %v282
    %884 = vmatprep.subr.mxu0 0.0
    %885 = vmatpush2.msra.mxu0 %v281
    %886 = vmatprep.subr.mxu0 0.0
    %887 = vmatpush2.msra.mxu0 %v280
    %888 = vmatprep.mubr.f32.mxu0 %v823
    %889 = vmatmul.mubr.f32.gmra.mxu0 %v822
    %v890 = vpop.f32.mrf.mxu0
    %v891 = vadd.f32 0.0, %v890
    %v892 = vpop.f32.mrf.mxu0
    %893 = vdwg.mxu0
    %v894 = vsel %vm370, %v891, -inf
    %895 = vmax.xlane.f32.xlu0 %v894
    %v896 = vpop.xlane.xlu0 %895
    %v897 = vsub.f32 %v891, %v896
    %v898 = vmul.f32 %v897, 1.442695
    %v899 = vpow.pop %v898
    %v900 = vsel %vm370, %v899, 0.0
    %901 = vadd.xlane.f32.xlu0 %v900
    %v902 = vpop.xlane.xlu0 %901
    %v903 = vrcp.pop %v902
    %v904 = vmul.f32 %v899, %v903
    %v906 = vsel %vm370, %v904, 0
    %908 = vmatprep.subr.mxu0 0.0
    %909 = vmatpush1.msra.mxu0 0.0
    %910 = vmatprep.subr.mxu0 0.0
    %911 = vmatpush1.msra.mxu0 0.0
    %912 = vmatprep.subr.mxu0 0.0
    %913 = vmatpush1.msra.mxu0 0.0
    %914 = vmatprep.subr.mxu0 0.0
    %915 = vmatpush1.msra.mxu0 0.0
    %916 = vmatprep.subr.mxu0 0.0
    %917 = vmatpush1.msra.mxu0 0.0
    %918 = vmatprep.subr.mxu0 0.0
    %919 = vmatpush1.msra.mxu0 0.0
    %920 = vmatprep.subr.mxu0 0.0
    %921 = vmatpush1.msra.mxu0 0.0
    %922 = vmatprep.subr.mxu0 0.0
    %923 = vmatpush1.msra.mxu0 0.0
    %924 = vmatprep.subr.mxu0 0.0
    %925 = vmatpush1.msra.mxu0 0.0
    %926 = vmatprep.subr.mxu0 0.0
    %927 = vmatpush1.msra.mxu0 0.0
    %928 = vmatprep.subr.mxu0 0.0
    %929 = vmatpush1.msra.mxu0 0.0
    %930 = vmatprep.subr.mxu0 0.0
    %931 = vmatpush1.msra.mxu0 0.0
    %932 = vmatprep.subr.mxu0 0.0
    %933 = vmatpush1.msra.mxu0 0.0
    %934 = vmatprep.subr.mxu0 0.0
    %935 = vmatpush1.msra.mxu0 0.0
    %936 = vmatprep.subr.mxu0 0.0
    %937 = vmatpush1.msra.mxu0 0.0
    %938 = vmatprep.subr.mxu0 %v297
    %939 = vmatpush1.msra.mxu0 %v296
    %940 = vmatprep.subr.mxu0 0.0
    %941 = vmatpush2.msra.mxu0 0.0
    %942 = vmatprep.subr.mxu0 0.0
    %943 = vmatpush2.msra.mxu0 0.0
    %944 = vmatprep.subr.mxu0 0.0
    %945 = vmatpush2.msra.mxu0 0.0
    %946 = vmatprep.subr.mxu0 0.0
    %947 = vmatpush2.msra.mxu0 0.0
    %948 = vmatprep.subr.mxu0 0.0
    %949 = vmatpush2.msra.mxu0 0.0
    %950 = vmatprep.subr.mxu0 0.0
    %951 = vmatpush2.msra.mxu0 0.0
    %952 = vmatprep.subr.mxu0 0.0
    %953 = vmatpush2.msra.mxu0 0.0
    %954 = vmatprep.subr.mxu0 0.0
    %955 = vmatpush2.msra.mxu0 0.0
    %956 = vmatprep.subr.mxu0 0.0
    %957 = vmatpush2.msra.mxu0 0.0
    %958 = vmatprep.subr.mxu0 0.0
    %959 = vmatpush2.msra.mxu0 0.0
    %960 = vmatprep.subr.mxu0 0.0
    %961 = vmatpush2.msra.mxu0 0.0
    %962 = vmatprep.subr.mxu0 0.0
    %963 = vmatpush2.msra.mxu0 0.0
    %964 = vmatprep.subr.mxu0 0.0
    %965 = vmatpush2.msra.mxu0 0.0
    %966 = vmatprep.subr.mxu0 0.0
    %967 = vmatpush2.msra.mxu0 0.0
    %968 = vmatprep.subr.mxu0 0.0
    %969 = vmatpush2.msra.mxu0 0.0
    %970 = vmatprep.subr.mxu0 0.0
    %971 = vmatpush2.msra.mxu0 0.0
    %972 = vmatprep.mubr.f32.mxu0 0.0
    %973 = vmatmul.mubr.f32.gmra.mxu0 %v906
    %v974 = vpop.f32.mrf.mxu0
    %v975 = vadd.f32 0.0, %v974
    %v976 = vpop.f32.mrf.mxu0
    %v977 = vadd.f32 0.0, %v976
    %978 = vdwg.mxu0
    %v979 = vmul.f32 %v21, %v975
    %v980 = vmul.f32 %v22, %v977
    %s981 = scalar_lea.vmem %s4, 512
    %v982 = vld [vmem:[%s981] sm:$0xff]
    %v983 = vld [vmem:[%s981 + $0x8] sm:$0xff]
    %v984 = vld [vmem:[%s981 + $0x10] sm:$0xff]
    %v985 = vld [vmem:[%s981 + $0x18] sm:$0xff]
    %v986 = vld [vmem:[%s981 + $0x20] sm:$0xff]
    %v987 = vld [vmem:[%s981 + $0x28] sm:$0xff]
    %v988 = vld [vmem:[%s981 + $0x30] sm:$0xff]
    %v989 = vld [vmem:[%s981 + $0x38] sm:$0xff]
    %v990 = vld [vmem:[%s981 + $0x40] sm:$0xff]
    %v991 = vld [vmem:[%s981 + $0x48] sm:$0xff]
    %v992 = vld [vmem:[%s981 + $0x50] sm:$0xff]
    %v993 = vld [vmem:[%s981 + $0x58] sm:$0xff]
    %v994 = vld [vmem:[%s981 + $0x60] sm:$0xff]
    %v995 = vld [vmem:[%s981 + $0x68] sm:$0xff]
    %v996 = vld [vmem:[%s981 + $0x70] sm:$0xff]
    %v997 = vld [vmem:[%s981 + $0x78] sm:$0xff]
    %v998 = vld [vmem:[%s981 + $0x80] sm:$0xff]
    %v999 = vld [vmem:[%s981 + $0x88] sm:$0xff]
    %v1000 = vld [vmem:[%s981 + $0x90] sm:$0xff]
    %v1001 = vld [vmem:[%s981 + $0x98] sm:$0xff]
    %v1002 = vld [vmem:[%s981 + $0xa0] sm:$0xff]
    %v1003 = vld [vmem:[%s981 + $0xa8] sm:$0xff]
    %v1004 = vld [vmem:[%s981 + $0xb0] sm:$0xff]
    %v1005 = vld [vmem:[%s981 + $0xb8] sm:$0xff]
    %v1006 = vld [vmem:[%s981 + $0xc0] sm:$0xff]
    %v1007 = vld [vmem:[%s981 + $0xc8] sm:$0xff]
    %v1008 = vld [vmem:[%s981 + $0xd0] sm:$0xff]
    %v1009 = vld [vmem:[%s981 + $0xd8] sm:$0xff]
    %v1010 = vld [vmem:[%s981 + $0xe0] sm:$0xff]
    %v1011 = vld [vmem:[%s981 + $0xe8] sm:$0xff]
    %v1012 = vld [vmem:[%s981 + $0xf0] sm:$0xff]
    %v1013 = vld [vmem:[%s981 + $0xf8] sm:$0xff]
    %1014 = vmatprep.subr.mxu0 0.0
    %1015 = vmatpush1.msra.mxu0 %v997
    %1016 = vmatprep.subr.mxu0 0.0
    %1017 = vmatpush1.msra.mxu0 %v996
    %1018 = vmatprep.subr.mxu0 0.0
    %1019 = vmatpush1.msra.mxu0 %v995
    %1020 = vmatprep.subr.mxu0 0.0
    %1021 = vmatpush1.msra.mxu0 %v994
    %1022 = vmatprep.subr.mxu0 0.0
    %1023 = vmatpush1.msra.mxu0 %v993
    %1024 = vmatprep.subr.mxu0 0.0
    %1025 = vmatpush1.msra.mxu0 %v992
    %1026 = vmatprep.subr.mxu0 0.0
    %1027 = vmatpush1.msra.mxu0 %v991
    %1028 = vmatprep.subr.mxu0 0.0
    %1029 = vmatpush1.msra.mxu0 %v990
    %1030 = vmatprep.subr.mxu0 0.0
    %1031 = vmatpush1.msra.mxu0 %v989
    %1032 = vmatprep.subr.mxu0 0.0
    %1033 = vmatpush1.msra.mxu0 %v988
    %1034 = vmatprep.subr.mxu0 0.0
    %1035 = vmatpush1.msra.mxu0 %v987
    %1036 = vmatprep.subr.mxu0 0.0
    %1037 = vmatpush1.msra.mxu0 %v986
    %1038 = vmatprep.subr.mxu0 0.0
    %1039 = vmatpush1.msra.mxu0 %v985
    %1040 = vmatprep.subr.mxu0 0.0
    %1041 = vmatpush1.msra.mxu0 %v984
    %1042 = vmatprep.subr.mxu0 0.0
    %1043 = vmatpush1.msra.mxu0 %v983
    %1044 = vmatprep.subr.mxu0 0.0
    %1045 = vmatpush1.msra.mxu0 %v982
    %1046 = vmatprep.subr.mxu0 0.0
    %1047 = vmatpush2.msra.mxu0 %v1013
    %1048 = vmatprep.subr.mxu0 0.0
    %1049 = vmatpush2.msra.mxu0 %v1012
    %1050 = vmatprep.subr.mxu0 0.0
    %1051 = vmatpush2.msra.mxu0 %v1011
    %1052 = vmatprep.subr.mxu0 0.0
    %1053 = vmatpush2.msra.mxu0 %v1010
    %1054 = vmatprep.subr.mxu0 0.0
    %1055 = vmatpush2.msra.mxu0 %v1009
    %1056 = vmatprep.subr.mxu0 0.0
    %1057 = vmatpush2.msra.mxu0 %v1008
    %1058 = vmatprep.subr.mxu0 0.0
    %1059 = vmatpush2.msra.mxu0 %v1007
    %1060 = vmatprep.subr.mxu0 0.0
    %1061 = vmatpush2.msra.mxu0 %v1006
    %1062 = vmatprep.subr.mxu0 0.0
    %1063 = vmatpush2.msra.mxu0 %v1005
    %1064 = vmatprep.subr.mxu0 0.0
    %1065 = vmatpush2.msra.mxu0 %v1004
    %1066 = vmatprep.subr.mxu0 0.0
    %1067 = vmatpush2.msra.mxu0 %v1003
    %1068 = vmatprep.subr.mxu0 0.0
    %1069 = vmatpush2.msra.mxu0 %v1002
    %1070 = vmatprep.subr.mxu0 0.0
    %1071 = vmatpush2.msra.mxu0 %v1001
    %1072 = vmatprep.subr.mxu0 0.0
    %1073 = vmatpush2.msra.mxu0 %v1000
    %1074 = vmatprep.subr.mxu0 0.0
    %1075 = vmatpush2.msra.mxu0 %v999
    %1076 = vmatprep.subr.mxu0 0.0
    %1077 = vmatpush2.msra.mxu0 %v998
    %1078 = vmatprep.mubr.f32.mxu0 %v980
    %1079 = vmatmul.mubr.f32.gmra.mxu0 %v979
    %v1080 = vpop.f32.mrf.mxu0
    %v1081 = vadd.f32 0.0, %v1080
    %v1082 = vpop.f32.mrf.mxu0
    %1083 = vdwg.mxu0
    %v1084 = vadd.f32 %v819, %v1081
    %v1085 = vmul.f32 %v1084, 0.33333334
    %1086 = vst.msk [vmem:[#allocation2] sm:$0xff] %vm47, %v1085
    // Predicated region
    $region22: #{tpu_custom_call.1} parent=1 // pred_check
      _
    $region23: #{tpu_custom_call.1} parent=1 // pred_check_branch
      %1088 = sbr.rel (0) target = $region25
    $region24: #{tpu_custom_call.1} parent=1 // pred_region
      %s1090 = ssub.s32 128, 128
      %1091 = vsyncadd [#allocation3], %s1090
      %s1093 = sshll.u32 [#allocation2], 4
      %s1094 = int_to_ptr.vmem [resolvable:$true] %s1093
      %1096 = dma.vmem_to_hbm [thread:$0]  %s1094, 128, %s5, [#allocation3]
    $region25: #{tpu_custom_call.1} parent=1 // pred_fallthru
      _
    // Predicated region
    $region26: #{tpu_custom_call.1} parent=1 // pred_check
      _
    $region27: #{tpu_custom_call.1} parent=1 // pred_check_branch
      %1098 = sbr.rel (0) target = $region29
    $region28: #{tpu_custom_call.1} parent=1 // pred_region
      %1099 = dma.done [#allocation3], 128
    $region29: #{tpu_custom_call.1} parent=1 // pred_fallthru
      _
    %1100 = vsyncpa [#allocation3], 1

</llo_original>
